<compile_context>
chip_gen: v5e
topology: v5e:2x2
jax: 0.10.0
libtpu: 0.0.40
codegen_flags: <defaults>
</compile_context>

<pallas_src>
import jax
import jax.numpy as jnp
from jax.experimental import pallas as pl
from jax.experimental.pallas import tpu as pltpu


def _se1d_kernel(x_ref, w1_ref, w2_ref, o_ref):
    # x_ref: (B_tile, C, L)   w1_ref: (Cr, C)   w2_ref: (C, Cr)   o_ref: (B_tile, C, L)
    x = x_ref[...].astype(jnp.float32)                       # (Bt, C, L), f32 compute path
    # squeeze: mean over the time (lane) axis, accumulated in f32
    z = jnp.mean(x, axis=-1)                                 # (Bt, C)

    w1 = w1_ref[...].astype(jnp.float32)                     # (Cr, C)
    w2 = w2_ref[...].astype(jnp.float32)                     # (C, Cr)

    # excitation MLP, batched across the batch tile (contract over C, then Cr)
    intermed = jnp.maximum(
        jax.lax.dot_general(z, w1, (((1,), (1,)), ((), ())),
                            preferred_element_type=jnp.float32),
        0.0,
    )                                                        # (Bt, Cr)
    s = jax.nn.sigmoid(
        jax.lax.dot_general(intermed, w2, (((1,), (1,)), ((), ())),
                            preferred_element_type=jnp.float32)
    )                                                        # (Bt, C)

    # scale + single fused store, no intermediate VMEM staging of the slab
    o_ref[...] = (s[:, :, None] * x).astype(o_ref.dtype)


def squeeze_excite_1d(x, w1, w2, *, vmem_budget_bytes=24 * 1024 * 1024):
    """x: (B, C, L); w1: (Cr, C); w2: (C, Cr). Returns (B, C, L)."""
    B, C, L = x.shape
    Cr = w1.shape[0]
    itemsize = jnp.dtype(x.dtype).itemsize
    slab_bytes = C * L * itemsize                 # one batch element (in OR out)

    # Largest batch tile whose double-buffered in+out slabs (4x block) fit the
    # budget; for small problems this collapses the grid to a single step.
    max_b_tile = max(1, vmem_budget_bytes // (4 * slab_bytes))
    b_tile = 1
    for d in range(1, B + 1):
        if B % d == 0 and d <= max_b_tile:
            b_tile = d

    # Megacore (v7x has 2 TCs): if everything fit in one step but each half is
    # still a large slab, split into 2 parallel grid steps instead.
    if B // b_tile == 1 and B % 2 == 0 and (B // 2) * slab_bytes >= (1 << 20):
        b_tile = B // 2

    grid = (B // b_tile,)

    # TODO(synk): for C*L slabs too large even at b_tile=1, switch to the
    # two-phase L-tiled structure (phase 1: accumulate per-channel sums over an
    # 'arbitrary' L axis; phase 2: stream L tiles again for the scale).

    return pl.pallas_call(
        _se1d_kernel,
        out_shape=jax.ShapeDtypeStruct((B, C, L), x.dtype),
        grid_spec=pltpu.PrefetchScalarGridSpec(
            num_scalar_prefetch=0,
            grid=grid,
            in_specs=[
                pl.BlockSpec((b_tile, C, L), lambda b: (b, 0, 0)),
                pl.BlockSpec((Cr, C), lambda b: (0, 0)),
                pl.BlockSpec((C, Cr), lambda b: (0, 0)),
            ],
            out_specs=pl.BlockSpec((b_tile, C, L), lambda b: (b, 0, 0)),
        ),
        compiler_params=pltpu.CompilerParams(
            dimension_semantics=("parallel",),
            vmem_limit_bytes=32 * 1024 * 1024,
        ),
    )(x, w1, w2)


def _reference(x, w1, w2):
    z = jnp.mean(x.astype(jnp.float32), axis=2, keepdims=True)       # (B, C, 1)
    intermed = jax.nn.relu(jnp.einsum("rc,bcl->brl", w1, z))          # (B, Cr, 1)
    s = jax.nn.sigmoid(jnp.einsum("cr,brl->bcl", w2, intermed))       # (B, C, 1)
    return (s * x).astype(x.dtype)


if __name__ == "__main__":
    # channels=32, reduction=16 -> channels_reduced=2 (mirrors torch __init__)
    B, C, L = 2, 32, 128
    reduction = 16
    Cr = C // reduction

    key = jax.random.PRNGKey(0)
    kx, k1, k2 = jax.random.split(key, 3)
    x = jax.random.normal(kx, (B, C, L), dtype=jnp.float32)
    # torch: w1 = randn(C_r, C).unsqueeze(0); w2 = randn(C, C_r).unsqueeze(0)
    # the leading broadcast dim of size 1 is dropped here (pure broadcast).
    w1 = jax.random.normal(k1, (Cr, C), dtype=jnp.float32)
    w2 = jax.random.normal(k2, (C, Cr), dtype=jnp.float32)

    out = squeeze_excite_1d(x, w1, w2)
    out = jax.block_until_ready(out)

    ref = _reference(x, w1, w2)
    assert out.shape == (B, C, L)
    assert jnp.allclose(out, ref, rtol=1e-5, atol=1e-5)

    print("KERNEL_OK")
</pallas_src>

<mosaic_0001>
module attributes {stable_mosaic.version = 11 : i64} {
  func.func @_se1d_kernel(%arg0: i32, %arg1: memref<2x32x128xf32, #tpu.memory_space<vmem>>, %arg2: memref<2x32xf32, #tpu.memory_space<vmem>>, %arg3: memref<32x2xf32, #tpu.memory_space<vmem>>, %arg4: memref<2x32x128xf32, #tpu.memory_space<vmem>>) attributes {dimension_semantics = [#tpu.dimension_semantics<parallel>], iteration_bounds = array<i64: 1>, scalar_prefetch = 0 : i64, scratch_operands = 0 : i64, tpu.core_type = #tpu.core_type<tc>, window_params = [{transform_indices = @transform_0, window_bounds = array<i64: 2, 32, 128>}, {pipeline_mode = #tpu.pipeline_mode<synchronous>, transform_indices = @transform_1, window_bounds = array<i64: 2, 32>}, {pipeline_mode = #tpu.pipeline_mode<synchronous>, transform_indices = @transform_2, window_bounds = array<i64: 32, 2>}, {transform_indices = @transform_3, window_bounds = array<i64: 2, 32, 128>}]} {
    %c0 = arith.constant 0 : index
    %c0_0 = arith.constant 0 : index
    %c0_1 = arith.constant 0 : index
    %0 = vector.load %arg1[%c0, %c0_0, %c0_1] : memref<2x32x128xf32, #tpu.memory_space<vmem>>, vector<2x32x128xf32>
    %cst = arith.constant dense<0.000000e+00> : vector<2x32xf32>
    %1 = vector.multi_reduction <add>, %0, %cst [2] : vector<2x32x128xf32> to vector<2x32xf32>
    %cst_2 = arith.constant 1.280000e+02 : f32
    %2 = vector.broadcast %cst_2 : f32 to vector<2x32xf32>
    %3 = arith.divf %1, %2 : vector<2x32xf32>
    %c0_3 = arith.constant 0 : index
    %c0_4 = arith.constant 0 : index
    %4 = vector.load %arg2[%c0_3, %c0_4] : memref<2x32xf32, #tpu.memory_space<vmem>>, vector<2x32xf32>
    %c0_5 = arith.constant 0 : index
    %c0_6 = arith.constant 0 : index
    %5 = vector.load %arg3[%c0_5, %c0_6] : memref<32x2xf32, #tpu.memory_space<vmem>>, vector<32x2xf32>
    %cst_7 = arith.constant dense<0.000000e+00> : vector<2x2xf32>
    %6 = tpu.matmul %3, %4, %cst_7 {dimension_numbers = #tpu.dot_dimension_numbers<[1], [1], [0], [0], [0, 0, 1, 0], [], []>} : vector<2x32xf32>, vector<2x32xf32>, vector<2x2xf32> -> vector<2x2xf32>
    %cst_8 = arith.constant 0.000000e+00 : f32
    %7 = vector.broadcast %cst_8 : f32 to vector<2x2xf32>
    %8 = arith.maximumf %6, %7 : vector<2x2xf32>
    %cst_9 = arith.constant dense<0.000000e+00> : vector<2x32xf32>
    %9 = tpu.matmul %8, %5, %cst_9 {dimension_numbers = #tpu.dot_dimension_numbers<[1], [1], [0], [0], [0, 0, 1, 0], [], []>} : vector<2x2xf32>, vector<32x2xf32>, vector<2x32xf32> -> vector<2x32xf32>
    %10 = arith.negf %9 : vector<2x32xf32>
    %11 = math.exp %10 : vector<2x32xf32>
    %cst_10 = arith.constant 1.000000e+00 : f32
    %12 = vector.broadcast %cst_10 : f32 to vector<2x32xf32>
    %13 = arith.addf %12, %11 : vector<2x32xf32>
    %14 = arith.divf %12, %13 : vector<2x32xf32>
    %15 = vector.shape_cast %14 : vector<2x32xf32> to vector<2x32x1xf32>
    %16 = vector.broadcast %15 : vector<2x32x1xf32> to vector<2x32x128xf32>
    %17 = arith.mulf %16, %0 : vector<2x32x128xf32>
    %c0_11 = arith.constant 0 : index
    %c0_12 = arith.constant 0 : index
    %c0_13 = arith.constant 0 : index
    %18 = vector.load %arg4[%c0_11, %c0_12, %c0_13] : memref<2x32x128xf32, #tpu.memory_space<vmem>>, vector<2x32x128xf32>
    tpu.vector_store %arg4[%c0_11, %c0_12, %c0_13], %17 {strides = array<i32>} : memref<2x32x128xf32, #tpu.memory_space<vmem>>, vector<2x32x128xf32>,
    return
  }
  func.func @transform_0(%arg0: i32) -> (i32, i32, i32) {
    %c0_i32 = arith.constant 0 : i32
    %c0_i32_0 = arith.constant 0 : i32
    %c0_i32_1 = arith.constant 0 : i32
    return %arg0, %c0_i32, %c0_i32_0 : i32, i32, i32
  }
  func.func @transform_1(%arg0: i32) -> (i32, i32) {
    %c0_i32 = arith.constant 0 : i32
    %c0_i32_0 = arith.constant 0 : i32
    %c0_i32_1 = arith.constant 0 : i32
    return %c0_i32, %c0_i32_0 : i32, i32
  }
  func.func @transform_2(%arg0: i32) -> (i32, i32) {
    %c0_i32 = arith.constant 0 : i32
    %c0_i32_0 = arith.constant 0 : i32
    %c0_i32_1 = arith.constant 0 : i32
    return %c0_i32, %c0_i32_0 : i32, i32
  }
  func.func @transform_3(%arg0: i32) -> (i32, i32, i32) {
    %c0_i32 = arith.constant 0 : i32
    %c0_i32_0 = arith.constant 0 : i32
    %c0_i32_1 = arith.constant 0 : i32
    return %arg0, %c0_i32, %c0_i32_0 : i32, i32, i32
  }
}

</mosaic_0001>

<llo_original>
// kernel: tpu_custom_call.1
$region0: #{tpu_custom_call.1}
  #allocation0 [shape = 'u32[]', space=smem, size = 0x4, offset = 0x4, fixed_abs, tag = 'smem constant byte address 0x4 - core index']
  #allocation1 [shape = 'u32[72,128]{1,0:T(1,128)}', space=vmem, size = 0x9000, scoped, tag = 'internal scratch']
  %s0 = inlined_call_operand.hbm [shape: f32[2,32,128], index: 0, kind: input, shape index: {}]
  %s1 = inlined_call_operand.vmem [shape: f32[2,32], index: 1, kind: input, shape index: {}]
  %s2 = inlined_call_operand.vmem [shape: f32[32,2], index: 2, kind: input, shape index: {}]
  %s3 = inlined_call_operand.hbm [shape: f32[2,32,128], index: 3, kind: output, shape index: {}]
  %s4 = sld [smem:[#allocation0]]
  $region26: #{tpu_custom_call.1} parent=0
    _
  %s6 = ssub.s32 1, %s4
  %s7 = scalar_select 0, %s6, %s4
  $region1: #{tpu_custom_call.1} parent=0
    #allocation2 [shape = 'u8[32768]{0}', space=vmem, size = 0x8000, scoped, tag = 'input window, operand 0, single buffered']
    #allocation3 [shape = 's32[1]{0}', space=sflag, size = 0x4, scoped, tag = 'scoped memory for tpu_custom_call.1']
    #allocation4 [shape = 's32[1]{0}', space=sflag, size = 0x4, scoped, tag = 'scoped memory for tpu_custom_call.1']
    #allocation5 [shape = 'u8[32768]{0}', space=vmem, size = 0x8000, scoped, tag = 'output window, operand 0, single buffered']
    %8 = vsyncpa [#allocation3], 0
    %9 = vsyncpa [#allocation4], 0
    // Predicated region
    $region2: #{tpu_custom_call.1} parent=1 // pred_check
      _
    $region3: #{tpu_custom_call.1} parent=1 // pred_check_branch
      %11 = sbr.rel (0) target = $region5
    $region4: #{tpu_custom_call.1} parent=1 // pred_region
      %13 = vsyncadd [#allocation3], 0
      %s14 = sshll.u32 %s0, 4
      %s15 = int_to_ptr.hbm [resolvable:$true] %s14
      %s16 = sshll.u32 [#allocation2], 4
      %s17 = int_to_ptr.vmem [resolvable:$true] %s16
      %22 = dma.hbm_to_vmem [thread:$0]  %s15, 1024, %s17, [#allocation3], 128, 128, 8
    $region5: #{tpu_custom_call.1} parent=1 // pred_fallthru
      _
    // Predicated region
    $region6: #{tpu_custom_call.1} parent=1 // pred_check
      _
    $region7: #{tpu_custom_call.1} parent=1 // pred_check_branch
      %24 = sbr.rel (0) target = $region9
    $region8: #{tpu_custom_call.1} parent=1 // pred_region
      _
    $region9: #{tpu_custom_call.1} parent=1 // pred_fallthru
      _
    // Predicated region
    $region10: #{tpu_custom_call.1} parent=1 // pred_check
      _
    $region11: #{tpu_custom_call.1} parent=1 // pred_check_branch
      %26 = sbr.rel (0) target = $region13
    $region12: #{tpu_custom_call.1} parent=1 // pred_region
      _
    $region13: #{tpu_custom_call.1} parent=1 // pred_fallthru
      _
    // Predicated region
    $region14: #{tpu_custom_call.1} parent=1 // pred_check
      _
    $region15: #{tpu_custom_call.1} parent=1 // pred_check_branch
      %28 = sbr.rel (0) target = $region17
    $region16: #{tpu_custom_call.1} parent=1 // pred_region
      %30 = dma.done [#allocation3], 1024
    $region17: #{tpu_custom_call.1} parent=1 // pred_fallthru
      _
    %v31 = vld [vmem:[#allocation2] sm:$0xff]
    %v32 = vld [vmem:[#allocation2 + $0x8] sm:$0xff]
    %v33 = vld [vmem:[#allocation2 + $0x10] sm:$0xff]
    %v34 = vld [vmem:[#allocation2 + $0x18] sm:$0xff]
    %v35 = vld [vmem:[#allocation2 + $0x20] sm:$0xff]
    %v36 = vld [vmem:[#allocation2 + $0x28] sm:$0xff]
    %v37 = vld [vmem:[#allocation2 + $0x30] sm:$0xff]
    %v38 = vld [vmem:[#allocation2 + $0x38] sm:$0xff]
    %39 = vadd.xlane.f32.xlu0 %v31
    %v40 = vpop.xlane.xlu0 %39
    %41 = vadd.xlane.f32.xlu0 %v32
    %v42 = vpop.xlane.xlu0 %41
    %43 = vadd.xlane.f32.xlu0 %v33
    %v44 = vpop.xlane.xlu0 %43
    %45 = vadd.xlane.f32.xlu0 %v34
    %v46 = vpop.xlane.xlu0 %45
    %47 = vadd.xlane.f32.xlu0 %v35
    %v48 = vpop.xlane.xlu0 %47
    %49 = vadd.xlane.f32.xlu0 %v36
    %v50 = vpop.xlane.xlu0 %49
    %51 = vadd.xlane.f32.xlu0 %v37
    %v52 = vpop.xlane.xlu0 %51
    %53 = vadd.xlane.f32.xlu0 %v38
    %v54 = vpop.xlane.xlu0 %53
    %v55 = vrcp.pop 128.0
    %v56 = vmul.f32 128.0, %v55
    %v57 = vsub.f32 1.0, %v56
    %v58 = vmul.f32 %v55, %v57
    %v59 = vadd.f32 %v55, %v58
    %vm60 = vweird.f32 %v55
    %v61 = vsel %vm60, %v55, %v59
    %v62 = vmul.f32 %v40, %v61
    %v63 = vmul.f32 %v42, %v61
    %v64 = vmul.f32 %v44, %v61
    %v65 = vmul.f32 %v46, %v61
    %v66 = vmul.f32 %v48, %v61
    %v67 = vmul.f32 %v50, %v61
    %v68 = vmul.f32 %v52, %v61
    %v69 = vmul.f32 %v54, %v61
    %v70 = vld [vmem:[%s1] sm:$0x3]
    %v71 = vld [vmem:[%s2] sm:$0xff]
    %v72 = vld [vmem:[%s2 + $0x8] sm:$0xff]
    %v73 = vld [vmem:[%s2 + $0x10] sm:$0xff]
    %v74 = vld [vmem:[%s2 + $0x18] sm:$0xff]
    %v83 = vlaneseq
    %v84 = vand.u32 %v83, 127
    %v85 = vperm.slane %v62, %v84
    %v86 = vadd.s32 %v84, 4294967288
    %v87 = vperm.slane %v63, %v86
    %vm88 = vcmask 130112
    %v89 = vsel %vm88, %v87, %v85
    %v90 = vadd.s32 %v84, 4294967280
    %v91 = vperm.slane %v64, %v90
    %vm92 = vcmask 195712
    %v93 = vsel %vm92, %v91, %v89
    %v94 = vadd.s32 %v84, 4294967272
    %v95 = vperm.slane %v65, %v94
    %vm96 = vcmask 261312
    %v97 = vsel %vm96, %v95, %v93
    %v98 = vperm.slane %v66, %v84
    %v99 = vperm.slane %v67, %v86
    %v100 = vsel %vm88, %v99, %v98
    %v101 = vperm.slane %v68, %v90
    %v102 = vsel %vm92, %v101, %v100
    %v103 = vperm.slane %v69, %v94
    %v104 = vsel %vm96, %v103, %v102
    %vm105 = vcmask 1041409
    %v106 = vsel %vm105, %v104, %v97
    %vm107 = vcmask 261120
    %v108 = vsel %vm107, %v106, 0
    %v111 = vsel %vm107, %v70, 0
    %113 = vmatpush.xpose.msra.mxu0 0.0
    %114 = vmatpush.xpose.msra.mxu0 0.0
    %115 = vmatpush.xpose.msra.mxu0 0.0
    %116 = vmatpush.xpose.msra.mxu0 0.0
    %117 = vmatpush.xpose.msra.mxu0 0.0
    %118 = vmatpush.xpose.msra.mxu0 0.0
    %119 = vmatpush.xpose.msra.mxu0 0.0
    %120 = vmatpush.xpose.msra.mxu0 0.0
    %121 = vmatpush.xpose.msra.mxu0 0.0
    %122 = vmatpush.xpose.msra.mxu0 0.0
    %123 = vmatpush.xpose.msra.mxu0 0.0
    %124 = vmatpush.xpose.msra.mxu0 0.0
    %125 = vmatpush.xpose.msra.mxu0 0.0
    %126 = vmatpush.xpose.msra.mxu0 0.0
    %127 = vmatpush.xpose.msra.mxu0 0.0
    %128 = vmatpush.xpose.msra.mxu0 %v111
    %129 = vmatmul.f32.gmra.mxu0 %v108
    %v130 = vpop.f32.mrf.mxu0
    %v131 = vadd.f32 0.0, %v130
    %132 = vdwg.mxu0
    %v133 = vmax.f32 %v131, 0.0
    %vm134 = vcmask 15360
    %v136 = vsel %vm134, %v133, 0
    %v139 = vsel %vm134, %v71, 0
    %v142 = vsel %vm134, %v72, 0
    %v145 = vsel %vm134, %v73, 0
    %v148 = vsel %vm134, %v74, 0
    %150 = vmatpush.xpose.msra.mxu0 0.0
    %151 = vmatpush.xpose.msra.mxu0 0.0
    %152 = vmatpush.xpose.msra.mxu0 0.0
    %153 = vmatpush.xpose.msra.mxu0 0.0
    %154 = vmatpush.xpose.msra.mxu0 0.0
    %155 = vmatpush.xpose.msra.mxu0 0.0
    %156 = vmatpush.xpose.msra.mxu0 0.0
    %157 = vmatpush.xpose.msra.mxu0 0.0
    %158 = vmatpush.xpose.msra.mxu0 0.0
    %159 = vmatpush.xpose.msra.mxu0 0.0
    %160 = vmatpush.xpose.msra.mxu0 0.0
    %161 = vmatpush.xpose.msra.mxu0 0.0
    %162 = vmatpush.xpose.msra.mxu0 %v148
    %163 = vmatpush.xpose.msra.mxu0 %v145
    %164 = vmatpush.xpose.msra.mxu0 %v142
    %165 = vmatpush.xpose.msra.mxu0 %v139
    %166 = vmatmul.f32.gmra.mxu0 %v136
    %v167 = vpop.f32.mrf.mxu0
    %v168 = vadd.f32 0.0, %v167
    %169 = vdwg.mxu0
    %v170 = vxor.u32 %v168, 2147483648
    %v171 = vmul.f32 %v170, 1.442695
    %v172 = vpow.pop %v171
    %v173 = vadd.f32 %v172, 1.0
    %v174 = vrcp.pop %v173
    %v175 = vmul.f32 %v173, %v174
    %v176 = vsub.f32 1.0, %v175
    %v177 = vmul.f32 %v174, %v176
    %v178 = vadd.f32 %v174, %v177
    %vm179 = vweird.f32 %v173
    %vm180 = vweird.f32 %v174
    %vm181 = vmor %vm179, %vm180
    %v182 = vsel %vm181, %v174, %v178
    %v183 = vand.u32 2147483647, %v173
    %vm184 = vcmp.eq.f32.partialorder %v183, 8.507059e+37
    %v185 = vand.u32 %v173, 2147483648
    %v186 = vor.u32 1.1754944e-38, %v185
    %v187 = vsel %vm184, %v186, %v182
    %v188 = vmul.f32 1.0, %v187
    %v189 = vperm.slane %v188, 0
    %v190 = vlaneseq
    %v191 = vshrl.u32 %v190, 7
    %193 = vset.pattern.permute.xlu0 %v191
    %194 = vperm.xlu0 %193, %v189
    %v195 = vpop.permute.xlu0 %194
    %v196 = vlaneseq
    %v197 = vshrl.u32 %v196, 7
    %v198 = vadd.s32 %v197, 8
    %199 = vset.pattern.permute.xlu0 %v198
    %200 = vperm.xlu0 %199, %v189
    %v201 = vpop.permute.xlu0 %200
    %v202 = vlaneseq
    %v203 = vshrl.u32 %v202, 7
    %v204 = vadd.s32 %v203, 16
    %205 = vset.pattern.permute.xlu0 %v204
    %206 = vperm.xlu0 %205, %v189
    %v207 = vpop.permute.xlu0 %206
    %v208 = vlaneseq
    %v209 = vshrl.u32 %v208, 7
    %v210 = vadd.s32 %v209, 24
    %211 = vset.pattern.permute.xlu0 %v210
    %212 = vperm.xlu0 %211, %v189
    %v213 = vpop.permute.xlu0 %212
    %v214 = vperm.slane %v188, 1
    %v215 = vlaneseq
    %v216 = vshrl.u32 %v215, 7
    %218 = vset.pattern.permute.xlu0 %v216
    %219 = vperm.xlu0 %218, %v214
    %v220 = vpop.permute.xlu0 %219
    %v221 = vlaneseq
    %v222 = vshrl.u32 %v221, 7
    %v223 = vadd.s32 %v222, 8
    %224 = vset.pattern.permute.xlu0 %v223
    %225 = vperm.xlu0 %224, %v214
    %v226 = vpop.permute.xlu0 %225
    %v227 = vlaneseq
    %v228 = vshrl.u32 %v227, 7
    %v229 = vadd.s32 %v228, 16
    %230 = vset.pattern.permute.xlu0 %v229
    %231 = vperm.xlu0 %230, %v214
    %v232 = vpop.permute.xlu0 %231
    %v233 = vlaneseq
    %v234 = vshrl.u32 %v233, 7
    %v235 = vadd.s32 %v234, 24
    %236 = vset.pattern.permute.xlu0 %v235
    %237 = vperm.xlu0 %236, %v214
    %v238 = vpop.permute.xlu0 %237
    %v239 = vmul.f32 %v195, %v31
    %v240 = vmul.f32 %v201, %v32
    %v241 = vmul.f32 %v207, %v33
    %v242 = vmul.f32 %v213, %v34
    %v243 = vmul.f32 %v220, %v35
    %v244 = vmul.f32 %v226, %v36
    %v245 = vmul.f32 %v232, %v37
    %v246 = vmul.f32 %v238, %v38
    %247 = vst [vmem:[#allocation5] sm:$0xff] %v239
    %248 = vst [vmem:[#allocation5 + $0x8] sm:$0xff] %v240
    %249 = vst [vmem:[#allocation5 + $0x10] sm:$0xff] %v241
    %250 = vst [vmem:[#allocation5 + $0x18] sm:$0xff] %v242
    %251 = vst [vmem:[#allocation5 + $0x20] sm:$0xff] %v243
    %252 = vst [vmem:[#allocation5 + $0x28] sm:$0xff] %v244
    %253 = vst [vmem:[#allocation5 + $0x30] sm:$0xff] %v245
    %254 = vst [vmem:[#allocation5 + $0x38] sm:$0xff] %v246
    // Predicated region
    $region18: #{tpu_custom_call.1} parent=1 // pred_check
      _
    $region19: #{tpu_custom_call.1} parent=1 // pred_check_branch
      %256 = sbr.rel (0) target = $region21
    $region20: #{tpu_custom_call.1} parent=1 // pred_region
      %258 = vsyncadd [#allocation4], 0
      %s259 = sshll.u32 [#allocation5], 4
      %s260 = int_to_ptr.vmem [resolvable:$true] %s259
      %s261 = sshll.u32 %s3, 4
      %s262 = int_to_ptr.hbm [resolvable:$true] %s261
      %267 = dma.vmem_to_hbm [thread:$0]  %s260, 1024, %s262, [#allocation4], 128, 128, 8
    $region21: #{tpu_custom_call.1} parent=1 // pred_fallthru
      _
    // Predicated region
    $region22: #{tpu_custom_call.1} parent=1 // pred_check
      _
    $region23: #{tpu_custom_call.1} parent=1 // pred_check_branch
      %269 = sbr.rel (0) target = $region25
    $region24: #{tpu_custom_call.1} parent=1 // pred_region
      %271 = dma.done [#allocation4], 1024
    $region25: #{tpu_custom_call.1} parent=1 // pred_fallthru
      _
    %272 = vsyncpa [#allocation3], 1
    %273 = vsyncpa [#allocation4], 1

</llo_original>
